<compile_context>
chip_gen: v5e
topology: v5e:2x2
jax: 0.10.0
libtpu: 0.0.40
codegen_flags: <defaults>
</compile_context>

<pallas_src>
import functools
import math

import jax
import jax.numpy as jnp
from jax.experimental import pallas as pl
from jax.experimental.pallas import tpu as pltpu


_VMEM_TILE_BUDGET = 40 * 1024 * 1024   # per-step footprint target (v7x-safe)
_VMEM_LIMIT_BYTES = 48 * 1024 * 1024   # explicit scoped-VMEM limit


def _attend(q, k, v, mask, o_ref, attn_ref, scale):
    """q: (tq, D); k, v: (S, D); mask: (tq, S) int/bool or None."""
    # Fold 1/sqrt(d_k) into Q: tq*D multiplies instead of tq*S on the scores.
    # Python-float scale keeps q's dtype (weak typing), numerics unchanged.
    q = q * scale

    # Q @ K^T on the MXU, f32 accumulation; inputs stay in their native dtype.
    scores = jax.lax.dot_general(
        q, k, (((1,), (1,)), ((), ())), preferred_element_type=jnp.float32)
    if mask is not None:
        scores = jnp.where(mask == 0, jnp.float32(-1.0e9), scores)

    # Numerically stable softmax along the key axis.  The full (tq, S) divide
    # is replaced by a per-row reciprocal on the EUP plus a broadcast multiply;
    # one Newton step on the (tq, 1) vector restores full f32 precision.
    m = jnp.max(scores, axis=-1, keepdims=True)
    p = jnp.exp(scores - m)
    denom = jnp.sum(p, axis=-1, keepdims=True)
    inv = pl.reciprocal(denom, approx=True)
    inv = inv * (2.0 - denom * inv)
    w = p * inv

    out = jnp.dot(w.astype(v.dtype), v, preferred_element_type=jnp.float32)

    # Weights are returned in the input dtype (matches PyTorch) and are the
    # same values fed to the PV matmul.
    attn_ref[...] = w.astype(attn_ref.dtype)
    o_ref[...] = out.astype(o_ref.dtype)


def _sdpa_kernel(q_ref, k_ref, v_ref, o_ref, attn_ref, *, scale):
    _attend(q_ref[...], k_ref[...], v_ref[...], None, o_ref, attn_ref, scale)


def _sdpa_kernel_masked(q_ref, k_ref, v_ref, m_ref, o_ref, attn_ref, *, scale):
    _attend(q_ref[...], k_ref[...], v_ref[...], m_ref[...], o_ref, attn_ref,
            scale)


def _pick_q_tile(seq_len, d, in_isz, attn_isz, mask_isz):
    """Largest tq (multiple of 8, divides S, <=128) fitting the VMEM budget."""
    if seq_len % 8 != 0:
        # Full-extent block: always legal; only hit for small / odd seq_len.
        return seq_len
    # K + V (budgeted as double-buffered: conservative for the fallback path).
    fixed = 4 * seq_len * d * in_isz
    per_row = (
        4 * d * in_isz                 # Q + O blocks, double-buffered
        + 2 * seq_len * attn_isz       # attn-weights block, double-buffered
        + 2 * seq_len * mask_isz       # mask block, double-buffered
        + 2 * seq_len * 4)             # f32 scores / exp intermediates
    tq = min(seq_len, 128)
    tq -= tq % 8
    while tq > 8:
        if seq_len % tq == 0 and fixed + tq * per_row <= _VMEM_TILE_BUDGET:
            return tq
        tq -= 8
    return 8


def scale_dot_product_attention(Q, K, V, mask=None):
    """Pallas equivalent of ScaleDotProductAttention().forward(Q, K, V, mask).

    Q, K, V: [batch, seq_len, d_k]
    mask   : optional [batch, seq_len, seq_len]; 0 -> masked out.  int8/bool
             masks are recommended (4x less HBM traffic than int32).
    returns: (output [B, S, D], attn_weights [B, S, S] in the input dtype)
    """
    B, S, D = Q.shape
    assert K.shape == (B, S, D) and V.shape == (B, S, D)
    scale = 1.0 / math.sqrt(D)

    attn_dtype = Q.dtype
    in_isz = jnp.dtype(Q.dtype).itemsize
    attn_isz = jnp.dtype(attn_dtype).itemsize
    mask_isz = 0
    if mask is not None:
        # TODO(synk): only full [B, S, S] masks supported (no broadcast shapes).
        assert mask.shape == (B, S, S)
        mask_isz = jnp.dtype(mask.dtype).itemsize

    tq = _pick_q_tile(S, D, in_isz, attn_isz, mask_isz)
    grid = (B, pl.cdiv(S, tq))

    out_shape = (
        jax.ShapeDtypeStruct((B, S, D), Q.dtype),
        jax.ShapeDtypeStruct((B, S, S), attn_dtype),
    )

    def run(single_buffer_kv):
        q_spec = pl.BlockSpec((None, tq, D), lambda b, qi: (b, qi, 0))
        kv_idx = lambda b, qi: (b, 0, 0)
        if single_buffer_kv:
            # Same K/V block across the whole inner qi axis -> one buffer each.
            kv_spec = pl.BlockSpec((None, S, D), kv_idx,
                                   pipeline_mode=pl.Buffered(1))
        else:
            kv_spec = pl.BlockSpec((None, S, D), kv_idx)
        out_specs = [
            pl.BlockSpec((None, tq, D), lambda b, qi: (b, qi, 0)),
            pl.BlockSpec((None, tq, S), lambda b, qi: (b, qi, 0)),
        ]
        if mask is None:
            kernel = functools.partial(_sdpa_kernel, scale=scale)
            in_specs = [q_spec, kv_spec, kv_spec]
            args = (Q, K, V)
        else:
            kernel = functools.partial(_sdpa_kernel_masked, scale=scale)
            mask_spec = pl.BlockSpec((None, tq, S), lambda b, qi: (b, qi, 0))
            in_specs = [q_spec, kv_spec, kv_spec, mask_spec]
            args = (Q, K, V, mask)
        return pl.pallas_call(
            kernel,
            out_shape=out_shape,
            grid_spec=pltpu.PrefetchScalarGridSpec(
                num_scalar_prefetch=0,
                grid=grid,
                in_specs=in_specs,
                out_specs=out_specs,
            ),
            compiler_params=pltpu.CompilerParams(
                dimension_semantics=("parallel", "parallel"),
                vmem_limit_bytes=_VMEM_LIMIT_BYTES,
            ),
        )(*args)

    try:
        return run(single_buffer_kv=True)
    except Exception:
        # Fallback for JAX versions where pipeline_mode=pl.Buffered(1) is not
        # accepted on a grid-pipelined BlockSpec; costs only extra VMEM.
        return run(single_buffer_kv=False)


def _reference(Q, K, V, mask=None):
    """Pure-JAX reference matching the PyTorch forward exactly."""
    d_k = Q.shape[-1]
    scores = jnp.einsum("bqd,bkd->bqk", Q, K) / math.sqrt(d_k)
    if mask is not None:
        scores = jnp.where(mask == 0, -1.0e9, scores)
    w = jax.nn.softmax(scores, axis=-1)
    out = jnp.einsum("bqk,bkd->bqd", w, V)
    return out, w


def _check(Q, K, V, mask=None, atol=1e-5, rtol=1e-5):
    out, attn = jax.block_until_ready(scale_dot_product_attention(Q, K, V, mask))
    ref_out, ref_attn = _reference(Q, K, V, mask)
    assert out.shape == ref_out.shape and attn.shape == ref_attn.shape
    assert jnp.allclose(attn, ref_attn, atol=atol, rtol=rtol)
    assert jnp.allclose(out, ref_out, atol=atol, rtol=rtol)


if __name__ == "__main__":
    key = jax.random.PRNGKey(0)

    # Matches the PyTorch example tensors: randn(5, 10, 64).
    B, S, D = 5, 10, 64
    kq, kk, kv, km, k2 = jax.random.split(key, 5)
    Q = jax.random.normal(kq, (B, S, D), dtype=jnp.float32)
    K = jax.random.normal(kk, (B, S, D), dtype=jnp.float32)
    V = jax.random.normal(kv, (B, S, D), dtype=jnp.float32)

    _check(Q, K, V)                                             # unmasked path
    mask = jax.random.randint(km, (B, S, S), 0, 2).astype(jnp.int8)
    _check(Q, K, V, mask)                                       # masked path

    # A lane-aligned case that exercises the query-tiling / K-V reuse path.
    B2, S2, D2 = 2, 256, 64
    kq2, kk2, kv2 = jax.random.split(k2, 3)
    Q2 = jax.random.normal(kq2, (B2, S2, D2), dtype=jnp.float32)
    K2 = jax.random.normal(kk2, (B2, S2, D2), dtype=jnp.float32)
    V2 = jax.random.normal(kv2, (B2, S2, D2), dtype=jnp.float32)
    _check(Q2, K2, V2)

    print("KERNEL_OK")
</pallas_src>

<mosaic_0001>
module attributes {stable_mosaic.version = 11 : i64} {
  func.func @_sdpa_kernel(%arg0: i32, %arg1: i32, %arg2: memref<1x10x64xf32, #tpu.memory_space<vmem>>, %arg3: memref<1x10x64xf32, #tpu.memory_space<vmem>>, %arg4: memref<1x10x64xf32, #tpu.memory_space<vmem>>, %arg5: memref<1x10x64xf32, #tpu.memory_space<vmem>>, %arg6: memref<1x10x10xf32, #tpu.memory_space<vmem>>) attributes {dimension_semantics = [#tpu.dimension_semantics<parallel>, #tpu.dimension_semantics<parallel>], iteration_bounds = array<i64: 5, 1>, scalar_prefetch = 0 : i64, scratch_operands = 0 : i64, tpu.core_type = #tpu.core_type<tc>, window_params = [{transform_indices = @transform_0, window_bounds = array<i64: 1, 10, 64>}, {pipeline_mode = #tpu.pipeline_mode<synchronous>, transform_indices = @transform_1, window_bounds = array<i64: 1, 10, 64>}, {pipeline_mode = #tpu.pipeline_mode<synchronous>, transform_indices = @transform_2, window_bounds = array<i64: 1, 10, 64>}, {transform_indices = @transform_3, window_bounds = array<i64: 1, 10, 64>}, {transform_indices = @transform_4, window_bounds = array<i64: 1, 10, 10>}]} {
    %c0 = arith.constant 0 : index
    %c0_0 = arith.constant 0 : index
    %c0_1 = arith.constant 0 : index
    %0 = vector.load %arg2[%c0, %c0_0, %c0_1] : memref<1x10x64xf32, #tpu.memory_space<vmem>>, vector<1x10x64xf32>
    %1 = vector.shape_cast %0 : vector<1x10x64xf32> to vector<10x64xf32>
    %c0_2 = arith.constant 0 : index
    %c0_3 = arith.constant 0 : index
    %c0_4 = arith.constant 0 : index
    %2 = vector.load %arg3[%c0_2, %c0_3, %c0_4] : memref<1x10x64xf32, #tpu.memory_space<vmem>>, vector<1x10x64xf32>
    %3 = vector.shape_cast %2 : vector<1x10x64xf32> to vector<10x64xf32>
    %c0_5 = arith.constant 0 : index
    %c0_6 = arith.constant 0 : index
    %c0_7 = arith.constant 0 : index
    %4 = vector.load %arg4[%c0_5, %c0_6, %c0_7] : memref<1x10x64xf32, #tpu.memory_space<vmem>>, vector<1x10x64xf32>
    %5 = vector.shape_cast %4 : vector<1x10x64xf32> to vector<10x64xf32>
    %cst = arith.constant 1.250000e-01 : f32
    %6 = vector.broadcast %cst : f32 to vector<10x64xf32>
    %7 = arith.mulf %1, %6 : vector<10x64xf32>
    %cst_8 = arith.constant dense<0.000000e+00> : vector<10x10xf32>
    %8 = tpu.matmul %7, %3, %cst_8 {dimension_numbers = #tpu.dot_dimension_numbers<[1], [1], [0], [0], [0, 0, 1, 0], [], []>} : vector<10x64xf32>, vector<10x64xf32>, vector<10x10xf32> -> vector<10x10xf32>
    %cst_9 = arith.constant dense<0xFF800000> : vector<10xf32>
    %9 = vector.multi_reduction <maximumf>, %8, %cst_9 [1] : vector<10x10xf32> to vector<10xf32>
    %10 = vector.shape_cast %9 : vector<10xf32> to vector<10x1xf32>
    %11 = vector.broadcast %10 : vector<10x1xf32> to vector<10x10xf32>
    %12 = arith.subf %8, %11 : vector<10x10xf32>
    %13 = math.exp %12 : vector<10x10xf32>
    %cst_10 = arith.constant dense<0.000000e+00> : vector<10xf32>
    %14 = vector.multi_reduction <add>, %13, %cst_10 [1] : vector<10x10xf32> to vector<10xf32>
    %15 = vector.shape_cast %14 : vector<10xf32> to vector<10x1xf32>
    %16 = tpu.reciprocal %15 {approx = true} : vector<10x1xf32> -> vector<10x1xf32>
    %17 = arith.mulf %15, %16 : vector<10x1xf32>
    %cst_11 = arith.constant 2.000000e+00 : f32
    %18 = vector.broadcast %cst_11 : f32 to vector<10x1xf32>
    %19 = arith.subf %18, %17 : vector<10x1xf32>
    %20 = arith.mulf %16, %19 : vector<10x1xf32>
    %21 = vector.broadcast %20 : vector<10x1xf32> to vector<10x10xf32>
    %22 = arith.mulf %13, %21 : vector<10x10xf32>
    %cst_12 = arith.constant dense<0.000000e+00> : vector<10x64xf32>
    %23 = tpu.matmul %22, %5, %cst_12 {dimension_numbers = #tpu.dot_dimension_numbers<[1], [0], [0], [1], [0, 0, 1, 1], [], []>} : vector<10x10xf32>, vector<10x64xf32>, vector<10x64xf32> -> vector<10x64xf32>
    %c0_13 = arith.constant 0 : index
    %c0_14 = arith.constant 0 : index
    %c0_15 = arith.constant 0 : index
    %24 = vector.load %arg6[%c0_13, %c0_14, %c0_15] : memref<1x10x10xf32, #tpu.memory_space<vmem>>, vector<1x10x10xf32>
    %25 = vector.shape_cast %24 : vector<1x10x10xf32> to vector<10x10xf32>
    %26 = vector.shape_cast %22 : vector<10x10xf32> to vector<1x10x10xf32>
    tpu.vector_store %arg6[%c0_13, %c0_14, %c0_15], %26 {strides = array<i32>} : memref<1x10x10xf32, #tpu.memory_space<vmem>>, vector<1x10x10xf32>,
    %c0_16 = arith.constant 0 : index
    %c0_17 = arith.constant 0 : index
    %c0_18 = arith.constant 0 : index
    %27 = vector.load %arg5[%c0_16, %c0_17, %c0_18] : memref<1x10x64xf32, #tpu.memory_space<vmem>>, vector<1x10x64xf32>
    %28 = vector.shape_cast %27 : vector<1x10x64xf32> to vector<10x64xf32>
    %29 = vector.shape_cast %23 : vector<10x64xf32> to vector<1x10x64xf32>
    tpu.vector_store %arg5[%c0_16, %c0_17, %c0_18], %29 {strides = array<i32>} : memref<1x10x64xf32, #tpu.memory_space<vmem>>, vector<1x10x64xf32>,
    return
  }
  func.func @transform_0(%arg0: i32, %arg1: i32) -> (i32, i32, i32) {
    %c0_i32 = arith.constant 0 : i32
    %c0_i32_0 = arith.constant 0 : i32
    return %arg0, %arg1, %c0_i32 : i32, i32, i32
  }
  func.func @transform_1(%arg0: i32, %arg1: i32) -> (i32, i32, i32) {
    %c0_i32 = arith.constant 0 : i32
    %c0_i32_0 = arith.constant 0 : i32
    %c0_i32_1 = arith.constant 0 : i32
    return %arg0, %c0_i32, %c0_i32_0 : i32, i32, i32
  }
  func.func @transform_2(%arg0: i32, %arg1: i32) -> (i32, i32, i32) {
    %c0_i32 = arith.constant 0 : i32
    %c0_i32_0 = arith.constant 0 : i32
    %c0_i32_1 = arith.constant 0 : i32
    return %arg0, %c0_i32, %c0_i32_0 : i32, i32, i32
  }
  func.func @transform_3(%arg0: i32, %arg1: i32) -> (i32, i32, i32) {
    %c0_i32 = arith.constant 0 : i32
    %c0_i32_0 = arith.constant 0 : i32
    return %arg0, %arg1, %c0_i32 : i32, i32, i32
  }
  func.func @transform_4(%arg0: i32, %arg1: i32) -> (i32, i32, i32) {
    %c0_i32 = arith.constant 0 : i32
    %c0_i32_0 = arith.constant 0 : i32
    return %arg0, %arg1, %c0_i32 : i32, i32, i32
  }
}

module attributes {stable_mosaic.version = 11 : i64} {
  func.func @_sdpa_kernel(%arg0: i32, %arg1: i32, %arg2: memref<1x10x64xf32, #tpu.memory_space<vmem>>, %arg3: memref<1x10x64xf32, #tpu.memory_space<vmem>>, %arg4: memref<1x10x64xf32, #tpu.memory_space<vmem>>, %arg5: memref<1x10x64xf32, #tpu.memory_space<vmem>>, %arg6: memref<1x10x10xf32, #tpu.memory_space<vmem>>) attributes {dimension_semantics = [#tpu.dimension_semantics<parallel>, #tpu.dimension_semantics<parallel>], iteration_bounds = array<i64: 5, 1>, scalar_prefetch = 0 : i64, scratch_operands = 0 : i64, tpu.core_type = #tpu.core_type<tc>, window_params = [{transform_indices = @transform_0, window_bounds = array<i64: 1, 10, 64>}, {transform_indices = @transform_1, window_bounds = array<i64: 1, 10, 64>}, {transform_indices = @transform_2, window_bounds = array<i64: 1, 10, 64>}, {transform_indices = @transform_3, window_bounds = array<i64: 1, 10, 64>}, {transform_indices = @transform_4, window_bounds = array<i64: 1, 10, 10>}]} {
    %c0 = arith.constant 0 : index
    %c0_0 = arith.constant 0 : index
    %c0_1 = arith.constant 0 : index
    %0 = vector.load %arg2[%c0, %c0_0, %c0_1] : memref<1x10x64xf32, #tpu.memory_space<vmem>>, vector<1x10x64xf32>
    %1 = vector.shape_cast %0 : vector<1x10x64xf32> to vector<10x64xf32>
    %c0_2 = arith.constant 0 : index
    %c0_3 = arith.constant 0 : index
    %c0_4 = arith.constant 0 : index
    %2 = vector.load %arg3[%c0_2, %c0_3, %c0_4] : memref<1x10x64xf32, #tpu.memory_space<vmem>>, vector<1x10x64xf32>
    %3 = vector.shape_cast %2 : vector<1x10x64xf32> to vector<10x64xf32>
    %c0_5 = arith.constant 0 : index
    %c0_6 = arith.constant 0 : index
    %c0_7 = arith.constant 0 : index
    %4 = vector.load %arg4[%c0_5, %c0_6, %c0_7] : memref<1x10x64xf32, #tpu.memory_space<vmem>>, vector<1x10x64xf32>
    %5 = vector.shape_cast %4 : vector<1x10x64xf32> to vector<10x64xf32>
    %cst = arith.constant 1.250000e-01 : f32
    %6 = vector.broadcast %cst : f32 to vector<10x64xf32>
    %7 = arith.mulf %1, %6 : vector<10x64xf32>
    %cst_8 = arith.constant dense<0.000000e+00> : vector<10x10xf32>
    %8 = tpu.matmul %7, %3, %cst_8 {dimension_numbers = #tpu.dot_dimension_numbers<[1], [1], [0], [0], [0, 0, 1, 0], [], []>} : vector<10x64xf32>, vector<10x64xf32>, vector<10x10xf32> -> vector<10x10xf32>
    %cst_9 = arith.constant dense<0xFF800000> : vector<10xf32>
    %9 = vector.multi_reduction <maximumf>, %8, %cst_9 [1] : vector<10x10xf32> to vector<10xf32>
    %10 = vector.shape_cast %9 : vector<10xf32> to vector<10x1xf32>
    %11 = vector.broadcast %10 : vector<10x1xf32> to vector<10x10xf32>
    %12 = arith.subf %8, %11 : vector<10x10xf32>
    %13 = math.exp %12 : vector<10x10xf32>
    %cst_10 = arith.constant dense<0.000000e+00> : vector<10xf32>
    %14 = vector.multi_reduction <add>, %13, %cst_10 [1] : vector<10x10xf32> to vector<10xf32>
    %15 = vector.shape_cast %14 : vector<10xf32> to vector<10x1xf32>
    %16 = tpu.reciprocal %15 {approx = true} : vector<10x1xf32> -> vector<10x1xf32>
    %17 = arith.mulf %15, %16 : vector<10x1xf32>
    %cst_11 = arith.constant 2.000000e+00 : f32
    %18 = vector.broadcast %cst_11 : f32 to vector<10x1xf32>
    %19 = arith.subf %18, %17 : vector<10x1xf32>
    %20 = arith.mulf %16, %19 : vector<10x1xf32>
    %21 = vector.broadcast %20 : vector<10x1xf32> to vector<10x10xf32>
    %22 = arith.mulf %13, %21 : vector<10x10xf32>
    %cst_12 = arith.constant dense<0.000000e+00> : vector<10x64xf32>
    %23 = tpu.matmul %22, %5, %cst_12 {dimension_numbers = #tpu.dot_dimension_numbers<[1], [0], [0], [1], [0, 0, 1, 1], [], []>} : vector<10x10xf32>, vector<10x64xf32>, vector<10x64xf32> -> vector<10x64xf32>
    %c0_13 = arith.constant 0 : index
    %c0_14 = arith.constant 0 : index
    %c0_15 = arith.constant 0 : index
    %24 = vector.load %arg6[%c0_13, %c0_14, %c0_15] : memref<1x10x10xf32, #tpu.memory_space<vmem>>, vector<1x10x10xf32>
    %25 = vector.shape_cast %24 : vector<1x10x10xf32> to vector<10x10xf32>
    %26 = vector.shape_cast %22 : vector<10x10xf32> to vector<1x10x10xf32>
    tpu.vector_store %arg6[%c0_13, %c0_14, %c0_15], %26 {strides = array<i32>} : memref<1x10x10xf32, #tpu.memory_space<vmem>>, vector<1x10x10xf32>,
    %c0_16 = arith.constant 0 : index
    %c0_17 = arith.constant 0 : index
    %c0_18 = arith.constant 0 : index
    %27 = vector.load %arg5[%c0_16, %c0_17, %c0_18] : memref<1x10x64xf32, #tpu.memory_space<vmem>>, vector<1x10x64xf32>
    %28 = vector.shape_cast %27 : vector<1x10x64xf32> to vector<10x64xf32>
    %29 = vector.shape_cast %23 : vector<10x64xf32> to vector<1x10x64xf32>
    tpu.vector_store %arg5[%c0_16, %c0_17, %c0_18], %29 {strides = array<i32>} : memref<1x10x64xf32, #tpu.memory_space<vmem>>, vector<1x10x64xf32>,
    return
  }
  func.func @transform_0(%arg0: i32, %arg1: i32) -> (i32, i32, i32) {
    %c0_i32 = arith.constant 0 : i32
    %c0_i32_0 = arith.constant 0 : i32
    return %arg0, %arg1, %c0_i32 : i32, i32, i32
  }
  func.func @transform_1(%arg0: i32, %arg1: i32) -> (i32, i32, i32) {
    %c0_i32 = arith.constant 0 : i32
    %c0_i32_0 = arith.constant 0 : i32
    %c0_i32_1 = arith.constant 0 : i32
    return %arg0, %c0_i32, %c0_i32_0 : i32, i32, i32
  }
  func.func @transform_2(%arg0: i32, %arg1: i32) -> (i32, i32, i32) {
    %c0_i32 = arith.constant 0 : i32
    %c0_i32_0 = arith.constant 0 : i32
    %c0_i32_1 = arith.constant 0 : i32
    return %arg0, %c0_i32, %c0_i32_0 : i32, i32, i32
  }
  func.func @transform_3(%arg0: i32, %arg1: i32) -> (i32, i32, i32) {
    %c0_i32 = arith.constant 0 : i32
    %c0_i32_0 = arith.constant 0 : i32
    return %arg0, %arg1, %c0_i32 : i32, i32, i32
  }
  func.func @transform_4(%arg0: i32, %arg1: i32) -> (i32, i32, i32) {
    %c0_i32 = arith.constant 0 : i32
    %c0_i32_0 = arith.constant 0 : i32
    return %arg0, %arg1, %c0_i32 : i32, i32, i32
  }
}

</mosaic_0001>

<llo_original>
// kernel: tpu_custom_call.1
$region0: #{tpu_custom_call.1}
  #allocation0 [shape = 'u32[]', space=smem, size = 0x4, offset = 0x4, fixed_abs, tag = 'smem constant byte address 0x4 - core index']
  #allocation1 [shape = 'u32[72,128]{1,0:T(1,128)}', space=vmem, size = 0x9000, scoped, tag = 'internal scratch']
  %s0 = inlined_call_operand.hbm [shape: f32[5,10,64], index: 0, kind: input, shape index: {}]
  %s1 = inlined_call_operand.hbm [shape: f32[5,10,64], index: 1, kind: input, shape index: {}]
  %s2 = inlined_call_operand.hbm [shape: f32[5,10,64], index: 2, kind: input, shape index: {}]
  %s3 = inlined_call_operand.hbm [shape: f32[5,10,64], index: 3, kind: output, shape index: {0}]
  %s4 = inlined_call_operand.hbm [shape: f32[5,10,10], index: 4, kind: output, shape index: {1}]
  %5 = xla_tuple %s3, %s4
  %s6 = sld [smem:[#allocation0]]
  $region65: #{tpu_custom_call.1} parent=0
    _
  %s8 = ssub.s32 1, %s6
  %s9 = scalar_select 0, %s8, %s6
  $region1: #{tpu_custom_call.1} parent=0
    #allocation2 [shape = 'u8[16384]{0}', space=vmem, size = 0x4000, scoped, tag = 'input window, operand 0']
    #allocation3 [shape = 's32[2]{0}', space=sflag, size = 0x8, scoped, tag = 'scoped memory for tpu_custom_call.1']
    #allocation4 [shape = 's32[2]{0}', space=sflag, size = 0x8, scoped, tag = 'scoped memory for tpu_custom_call.1']
    #allocation5 [shape = 'u8[8192]{0}', space=vmem, size = 0x2000, scoped, tag = 'input window, operand 1, single buffered']
    #allocation6 [shape = 's32[1]{0}', space=sflag, size = 0x4, scoped, tag = 'scoped memory for tpu_custom_call.1']
    #allocation7 [shape = 'u8[8192]{0}', space=vmem, size = 0x2000, scoped, tag = 'input window, operand 2, single buffered']
    #allocation8 [shape = 'u8[16384]{0}', space=vmem, size = 0x4000, scoped, tag = 'output window, operand 0']
    #allocation9 [shape = 'u8[16384]{0}', space=vmem, size = 0x4000, scoped, tag = 'output window, operand 1']
    #allocation10 [shape = 's32[2]{0}', space=sflag, size = 0x8, scoped, tag = 'scoped memory for tpu_custom_call.1']
    %10 = vsyncpa [#allocation3], 0
    %s11 = scalar_lea.sflag [#allocation3], 1
    %12 = vsyncpa %s11, 0
    %13 = vsyncpa [#allocation6], 0
    %14 = vsyncpa [#allocation4], 0
    %s15 = scalar_lea.sflag [#allocation4], 1
    %16 = vsyncpa %s15, 0
    %17 = vsyncpa [#allocation10], 0
    %s18 = scalar_lea.sflag [#allocation10], 1
    %19 = vsyncpa %s18, 0
    loop: start=0, step=1, limit=7
    $region2: #{tpu_custom_call.1} parent=1 // loop_pre_header
      _
    $region3: #{tpu_custom_call.1} parent=1 // loop_header
      %s21 = sphi 0, %s25
      %p22 = scmp.ge.s32.totalorder %s21, 7
      %s28 = sphi 0, %s40
      %s29 = sphi 0, %s36
      %s30 = sphi 0, %s28
      %s31 = sphi 0, %s29
      %s32 = sphi 0, %s30
      %s33 = sphi 0, %s31
      %s45 = sphi 0, %s47
      %s48 = sphi 0, %s45
      %s49 = sphi 0, %s48
      %s65 = sphi 0, %s49
      %s71 = sphi 0, %s73
      %s74 = sphi 0, %s71
      %s75 = sphi 0, %s74
      %s91 = sphi 0, %s75
      %s97 = sphi 0, %s99
      %s100 = sphi 0, %s97
      %s101 = sphi 0, %s100
      %s117 = sphi 0, %s101
      %s125 = sphi 0, %s127
      %s128 = sphi 0, %s125
      %s129 = sphi 0, %s128
      %s145 = sphi 0, %s129
      %s153 = sphi 0, %s155
      %s156 = sphi 0, %s153
      %s157 = sphi 0, %s156
      %s173 = sphi 0, %s157
    $region4: #{tpu_custom_call.1} parent=1 // loop_header_branch
      %24 = sbr.rel (%p22) target = $region8
    $region5: #{tpu_custom_call.1} parent=1 // loop_body
      %s26 = ssub.s32 %s21, 1
      %s27 = ssub.s32 %s21, 2
      %s34 = sadd.s32 1, %s29
      %p35 = scmp.ge.s32.totalorder %s34, 1
      %s36 = scalar_select %p35, 0, %s34
      %s37 = sadd.s32 1, %s28
      %s38 = scalar_select %p35, %s37, %s28
      %p39 = scmp.ge.s32.totalorder %s38, 5
      %s40 = scalar_select %p39, 0, %s38
      %s41 = ssub.s32 %s28, %s40
      %s42 = ssub.s32 %s29, %s36
      %s43 = sor.u32 %s41, %s42
      %p44 = scmp.eq.s32.totalorder %s43, 0
      %s46 = sadd.s32 %s45, 1
      %s47 = scalar_select %p44, %s45, %s46
      %p50 = pneg %p44
      %p51 = scmp.eq.s32.totalorder %s21, 4
      %p52 = por %p50, %p51
      %p53 = scmp.ne.s32.totalorder %s45, %s48
      %p54 = scmp.eq.s32.totalorder %s21, 0
      %p55 = por %p53, %p54
      %p56 = scmp.ne.s32.totalorder %s45, %s48
      %p57 = scmp.eq.s32.totalorder %s26, 4
      %p58 = por %p56, %p57
      %p59 = scmp.ne.s32.totalorder %s48, %s49
      %p60 = scmp.eq.s32.totalorder %s26, 0
      %p61 = por %p59, %p60
      %p62 = scmp.ne.s32.totalorder %s48, %s49
      %p63 = scmp.eq.s32.totalorder %s27, 4
      %p64 = por %p62, %p63
      %p66 = scmp.ne.s32.totalorder %s49, %s65
      %p67 = scmp.eq.s32.totalorder %s27, 0
      %p68 = por %p66, %p67
      %s69 = ssub.s32 %s28, %s40
      %p70 = scmp.eq.s32.totalorder %s69, 0
      %s72 = sadd.s32 %s71, 1
      %s73 = scalar_select %p70, %s71, %s72
      %p76 = pneg %p70
      %p77 = scmp.eq.s32.totalorder %s21, 4
      %p78 = por %p76, %p77
      %p79 = scmp.ne.s32.totalorder %s71, %s74
      %p80 = scmp.eq.s32.totalorder %s21, 0
      %p81 = por %p79, %p80
      %p82 = scmp.ne.s32.totalorder %s71, %s74
      %p83 = scmp.eq.s32.totalorder %s26, 4
      %p84 = por %p82, %p83
      %p85 = scmp.ne.s32.totalorder %s74, %s75
      %p86 = scmp.eq.s32.totalorder %s26, 0
      %p87 = por %p85, %p86
      %p88 = scmp.ne.s32.totalorder %s74, %s75
      %p89 = scmp.eq.s32.totalorder %s27, 4
      %p90 = por %p88, %p89
      %p92 = scmp.ne.s32.totalorder %s75, %s91
      %p93 = scmp.eq.s32.totalorder %s27, 0
      %p94 = por %p92, %p93
      %s95 = ssub.s32 %s28, %s40
      %p96 = scmp.eq.s32.totalorder %s95, 0
      %s98 = sadd.s32 %s97, 1
      %s99 = scalar_select %p96, %s97, %s98
      %p102 = pneg %p96
      %p103 = scmp.eq.s32.totalorder %s21, 4
      %p104 = por %p102, %p103
      %p105 = scmp.ne.s32.totalorder %s97, %s100
      %p106 = scmp.eq.s32.totalorder %s21, 0
      %p107 = por %p105, %p106
      %p108 = scmp.ne.s32.totalorder %s97, %s100
      %p109 = scmp.eq.s32.totalorder %s26, 4
      %p110 = por %p108, %p109
      %p111 = scmp.ne.s32.totalorder %s100, %s101
      %p112 = scmp.eq.s32.totalorder %s26, 0
      %p113 = por %p111, %p112
      %p114 = scmp.ne.s32.totalorder %s100, %s101
      %p115 = scmp.eq.s32.totalorder %s27, 4
      %p116 = por %p114, %p115
      %p118 = scmp.ne.s32.totalorder %s101, %s117
      %p119 = scmp.eq.s32.totalorder %s27, 0
      %p120 = por %p118, %p119
      %s121 = ssub.s32 %s28, %s40
      %s122 = ssub.s32 %s29, %s36
      %s123 = sor.u32 %s121, %s122
      %p124 = scmp.eq.s32.totalorder %s123, 0
      %s126 = sadd.s32 %s125, 1
      %s127 = scalar_select %p124, %s125, %s126
      %p130 = pneg %p124
      %p131 = scmp.eq.s32.totalorder %s21, 4
      %p132 = por %p130, %p131
      %p133 = scmp.ne.s32.totalorder %s125, %s128
      %p134 = scmp.eq.s32.totalorder %s21, 0
      %p135 = por %p133, %p134
      %p136 = scmp.ne.s32.totalorder %s125, %s128
      %p137 = scmp.eq.s32.totalorder %s26, 4
      %p138 = por %p136, %p137
      %p139 = scmp.ne.s32.totalorder %s128, %s129
      %p140 = scmp.eq.s32.totalorder %s26, 0
      %p141 = por %p139, %p140
      %p142 = scmp.ne.s32.totalorder %s128, %s129
      %p143 = scmp.eq.s32.totalorder %s27, 4
      %p144 = por %p142, %p143
      %p146 = scmp.ne.s32.totalorder %s129, %s145
      %p147 = scmp.eq.s32.totalorder %s27, 0
      %p148 = por %p146, %p147
      %s149 = ssub.s32 %s28, %s40
      %s150 = ssub.s32 %s29, %s36
      %s151 = sor.u32 %s149, %s150
      %p152 = scmp.eq.s32.totalorder %s151, 0
      %s154 = sadd.s32 %s153, 1
      %s155 = scalar_select %p152, %s153, %s154
      %p158 = pneg %p152
      %p159 = scmp.eq.s32.totalorder %s21, 4
      %p160 = por %p158, %p159
      %p161 = scmp.ne.s32.totalorder %s153, %s156
      %p162 = scmp.eq.s32.totalorder %s21, 0
      %p163 = por %p161, %p162
      %p164 = scmp.ne.s32.totalorder %s153, %s156
      %p165 = scmp.eq.s32.totalorder %s26, 4
      %p166 = por %p164, %p165
      %p167 = scmp.ne.s32.totalorder %s156, %s157
      %p168 = scmp.eq.s32.totalorder %s26, 0
      %p169 = por %p167, %p168
      %p170 = scmp.ne.s32.totalorder %s156, %s157
      %p171 = scmp.eq.s32.totalorder %s27, 4
      %p172 = por %p170, %p171
      %p174 = scmp.ne.s32.totalorder %s157, %s173
      %p175 = scmp.eq.s32.totalorder %s27, 0
      %p176 = por %p174, %p175
      %p177 = scmp.le.s32.totalorder 1, %s21
      %p178 = scmp.lt.s32.totalorder %s21, 6
      %p179 = pnand %p177, %p178
      %p180 = pneg %p179
      // Predicated region
      $region9: #{tpu_custom_call.1} parent=5 // pred_check
        _
      $region10: #{tpu_custom_call.1} parent=5 // pred_check_branch
        %182 = sbr.rel (%p179) target = $region12
      $region11: #{tpu_custom_call.1} parent=5 // pred_region
        %s183 = ssub.s32 %s21, 1
        // Predicated region
        $region13: #{tpu_custom_call.1} parent=11 // pred_check
          %p184 = pneg %p87
        $region14: #{tpu_custom_call.1} parent=11 // pred_check_branch
          %186 = sbr.rel (%p184) target = $region16
        $region15: #{tpu_custom_call.1} parent=11 // pred_region
          %188 = vsyncadd [#allocation6], 0
          %s189 = smul.addr %s30, 2
          %s190 = smul.addr %s189, 8
          %s191 = scalar_lea.hbm %s1, %s190
          %s192 = sshll.u32 %s191, 4
          %s193 = int_to_ptr.hbm [resolvable:$true] %s192
          %s194 = sshll.u32 [#allocation5], 4
          %s195 = int_to_ptr.vmem [resolvable:$true] %s194
          %200 = dma.hbm_to_vmem [thread:$0]  %s193, 256, %s195, [#allocation6], 128, 128, 8
        $region16: #{tpu_custom_call.1} parent=11 // pred_fallthru
          _
        // Predicated region
        $region17: #{tpu_custom_call.1} parent=11 // pred_check
          %p201 = pneg %p113
        $region18: #{tpu_custom_call.1} parent=11 // pred_check_branch
          %203 = sbr.rel (%p201) target = $region20
        $region19: #{tpu_custom_call.1} parent=11 // pred_region
          %205 = vsyncadd [#allocation6], 0
          %s206 = smul.addr %s30, 2
          %s207 = smul.addr %s206, 8
          %s208 = scalar_lea.hbm %s2, %s207
          %s209 = sshll.u32 %s208, 4
          %s210 = int_to_ptr.hbm [resolvable:$true] %s209
          %s211 = sshll.u32 [#allocation7], 4
          %s212 = int_to_ptr.vmem [resolvable:$true] %s211
          %217 = dma.hbm_to_vmem [thread:$0]  %s210, 256, %s212, [#allocation6], 128, 128, 8
        $region20: #{tpu_custom_call.1} parent=11 // pred_fallthru
          _
      $region12: #{tpu_custom_call.1} parent=5 // pred_fallthru
        _
      %p218 = scmp.lt.s32.totalorder %s21, 5
      // Predicated region
      $region21: #{tpu_custom_call.1} parent=5 // pred_check
        %p219 = pneg %p218
      $region22: #{tpu_custom_call.1} parent=5 // pred_check_branch
        %221 = sbr.rel (%p219) target = $region24
      $region23: #{tpu_custom_call.1} parent=5 // pred_region
        // Predicated region
        $region25: #{tpu_custom_call.1} parent=23 // pred_check
          %p222 = pneg %p55
        $region26: #{tpu_custom_call.1} parent=23 // pred_check_branch
          %224 = sbr.rel (%p222) target = $region28
        $region27: #{tpu_custom_call.1} parent=23 // pred_region
          %s225 = sand.u32 %s45, 1
          %s226 = scalar_lea.sflag [#allocation3], %s225
          %s227 = sand.u32 %s45, 1
          %s228 = smul.addr %s227, 16
          %s229 = scalar_lea.vmem [#allocation2], %s228
          %s230 = smul.u32 2, %s29
          %232 = vsyncadd %s226, 0
          %s233 = smul.addr %s28, 2
          %s234 = sadd.s32 %s230, %s233
          %s235 = smul.addr %s234, 8
          %s236 = scalar_lea.hbm %s0, %s235
          %s237 = sshll.u32 %s236, 4
          %s238 = int_to_ptr.hbm [resolvable:$true] %s237
          %s239 = sshll.u32 %s229, 4
          %s240 = int_to_ptr.vmem [resolvable:$true] %s239
          %245 = dma.hbm_to_vmem [thread:$0]  %s238, 256, %s240, %s226, 128, 128, 8
        $region28: #{tpu_custom_call.1} parent=23 // pred_fallthru
          _
      $region24: #{tpu_custom_call.1} parent=5 // pred_fallthru
        _
      %p246 = scmp.le.s32.totalorder 1, %s21
      %p247 = scmp.lt.s32.totalorder %s21, 6
      %p248 = pnand %p246, %p247
      %p249 = pneg %p248
      // Predicated region
      $region29: #{tpu_custom_call.1} parent=5 // pred_check
        _
      $region30: #{tpu_custom_call.1} parent=5 // pred_check_branch
        %251 = sbr.rel (%p248) target = $region32
      $region31: #{tpu_custom_call.1} parent=5 // pred_region
        %s252 = ssub.s32 %s21, 1
        %s253 = sand.u32 %s48, 1
        %s254 = scalar_lea.sflag [#allocation3], %s253
        %s255 = sand.u32 %s48, 1
        %s256 = smul.addr %s255, 16
        %s257 = scalar_lea.vmem [#allocation2], %s256
        // Predicated region
        $region33: #{tpu_custom_call.1} parent=31 // pred_check
          %p258 = pneg %p61
        $region34: #{tpu_custom_call.1} parent=31 // pred_check_branch
          %260 = sbr.rel (%p258) target = $region36
        $region35: #{tpu_custom_call.1} parent=31 // pred_region
          %262 = dma.done %s254, 256
        $region36: #{tpu_custom_call.1} parent=31 // pred_fallthru
          _
        // Predicated region
        $region37: #{tpu_custom_call.1} parent=31 // pred_check
          %p263 = pneg %p87
        $region38: #{tpu_custom_call.1} parent=31 // pred_check_branch
          %265 = sbr.rel (%p263) target = $region40
        $region39: #{tpu_custom_call.1} parent=31 // pred_region
          %267 = dma.done [#allocation6], 256
        $region40: #{tpu_custom_call.1} parent=31 // pred_fallthru
          _
        // Predicated region
        $region41: #{tpu_custom_call.1} parent=31 // pred_check
          %p268 = pneg %p113
        $region42: #{tpu_custom_call.1} parent=31 // pred_check_branch
          %270 = sbr.rel (%p268) target = $region44
        $region43: #{tpu_custom_call.1} parent=31 // pred_region
          %272 = dma.done [#allocation6], 256
        $region44: #{tpu_custom_call.1} parent=31 // pred_fallthru
          _
        %s273 = sand.u32 %s48, 1
        %s274 = scalar_lea.sflag [#allocation3], %s273
        %s275 = sand.u32 %s48, 1
        %s276 = smul.addr %s275, 16
        %s277 = scalar_lea.vmem [#allocation2], %s276
        %p278 = pneg %p61
        %p279 = pneg %p58
        %p280 = pneg %p87
        %p281 = pneg %p84
        %p282 = pneg %p113
        %p283 = pneg %p110
        %p284 = pneg %p141
        %p285 = pneg %p138
        %s286 = sand.u32 %s128, 1
        %s287 = scalar_lea.sflag [#allocation4], %s286
        %s288 = sand.u32 %s128, 1
        %s289 = smul.addr %s288, 16
        %s290 = scalar_lea.vmem [#allocation8], %s289
        %p291 = pneg %p169
        %p292 = pneg %p166
        %s293 = sand.u32 %s156, 1
        %s294 = scalar_lea.sflag [#allocation10], %s293
        %s295 = sand.u32 %s156, 1
        %s296 = smul.addr %s295, 16
        %s297 = scalar_lea.vmem [#allocation9], %s296
        %s298 = smul.u32 2, %s31
        %s299 = smul.u32 2, %s31
        %s300 = smul.u32 2, %s31
        %v301 = vld [vmem:[%s257] sm:$0xff]
        %v302 = vld [vmem:[%s257 + $0x8] sm:$0x3]
        %v303 = vld [vmem:[#allocation5] sm:$0xff]
        %v304 = vld [vmem:[#allocation5 + $0x8] sm:$0x3]
        %v305 = vld [vmem:[#allocation7] sm:$0xff]
        %v306 = vld [vmem:[#allocation7 + $0x8] sm:$0x3]
        %v307 = vmul.f32 %v301, 0.125
        %v308 = vmul.f32 %v302, 0.125
        %vm309 = vcmask 523264
        %v311 = vsel %vm309, %v307, 0
        %v314 = vsel %vm309, %v308, 0
        %v317 = vsel %vm309, %v303, 0
        %v320 = vsel %vm309, %v304, 0
        %322 = vmatpush.xpose.msra.mxu0 0.0
        %323 = vmatpush.xpose.msra.mxu0 0.0
        %324 = vmatpush.xpose.msra.mxu0 0.0
        %325 = vmatpush.xpose.msra.mxu0 0.0
        %326 = vmatpush.xpose.msra.mxu0 0.0
        %327 = vmatpush.xpose.msra.mxu0 0.0
        %328 = vmatpush.xpose.msra.mxu0 0.0
        %329 = vmatpush.xpose.msra.mxu0 0.0
        %330 = vmatpush.xpose.msra.mxu0 0.0
        %331 = vmatpush.xpose.msra.mxu0 0.0
        %332 = vmatpush.xpose.msra.mxu0 0.0
        %333 = vmatpush.xpose.msra.mxu0 0.0
        %334 = vmatpush.xpose.msra.mxu0 0.0
        %335 = vmatpush.xpose.msra.mxu0 0.0
        %336 = vmatpush.xpose.msra.mxu0 %v320
        %337 = vmatpush.xpose.msra.mxu0 %v317
        %338 = vmatmul.f32.gmra.mxu0 %v311
        %v339 = vpop.f32.mrf.mxu0
        %v340 = vadd.f32 0.0, %v339
        %341 = vmatmul.f32.gmra.mxu0 %v314
        %v342 = vpop.f32.mrf.mxu0
        %v343 = vadd.f32 0.0, %v342
        %344 = vdwg.mxu0
        %vm345 = vcmask 80896
        %v346 = vsel %vm345, %v340, -inf
        %347 = vmax.xlane.f32.xlu0 %v346
        %v348 = vpop.xlane.xlu0 %347
        %vm349 = vcmask 74752
        %v350 = vsel %vm349, %v343, -inf
        %351 = vmax.xlane.f32.xlu0 %v350
        %v352 = vpop.xlane.xlu0 %351
        %v353 = vsub.f32 %v340, %v348
        %v354 = vsub.f32 %v343, %v352
        %v355 = vmul.f32 %v353, 1.442695
        %v356 = vpow.pop %v355
        %v357 = vmul.f32 %v354, 1.442695
        %v358 = vpow.pop %v357
        %v359 = vsel %vm345, %v356, 0.0
        %360 = vadd.xlane.f32.xlu0 %v359
        %v361 = vpop.xlane.xlu0 %360
        %v362 = vsel %vm349, %v358, 0.0
        %363 = vadd.xlane.f32.xlu0 %v362
        %v364 = vpop.xlane.xlu0 %363
        %v365 = vrcp.pop %v361
        %v366 = vrcp.pop %v364
        %v367 = vmul.f32 %v361, %v365
        %v368 = vmul.f32 %v364, %v366
        %v369 = vsub.f32 2.0, %v367
        %v370 = vsub.f32 2.0, %v368
        %v371 = vmul.f32 %v365, %v369
        %v372 = vmul.f32 %v366, %v370
        %v373 = vmul.f32 %v356, %v371
        %v374 = vmul.f32 %v358, %v372
        %v376 = vsel %vm345, %v373, 0
        %v379 = vsel %vm345, %v374, 0
        %vm381 = vcmask 1041408
        %v383 = vsel %vm381, %v306, 0
        %385 = vmatpush.msra.mxu0 0.0
        %386 = vmatpush.msra.mxu0 0.0
        %387 = vmatpush.msra.mxu0 0.0
        %388 = vmatpush.msra.mxu0 0.0
        %389 = vmatpush.msra.mxu0 0.0
        %390 = vmatpush.msra.mxu0 0.0
        %391 = vmatpush.msra.mxu0 0.0
        %392 = vmatpush.msra.mxu0 0.0
        %393 = vmatpush.msra.mxu0 0.0
        %394 = vmatpush.msra.mxu0 0.0
        %395 = vmatpush.msra.mxu0 0.0
        %396 = vmatpush.msra.mxu0 0.0
        %397 = vmatpush.msra.mxu0 0.0
        %398 = vmatpush.msra.mxu0 0.0
        %399 = vmatpush.msra.mxu0 %v383
        %400 = vmatpush.msra.mxu0 %v305
        %401 = vmatmul.f32.gmra.mxu0 %v376
        %v402 = vpop.f32.mrf.mxu0
        %v403 = vadd.f32 0.0, %v402
        %404 = vmatmul.f32.gmra.mxu0 %v379
        %v405 = vpop.f32.mrf.mxu0
        %v406 = vadd.f32 0.0, %v405
        %407 = vdwg.mxu0
        %408 = vst.msk [vmem:[%s297] sm:$0xff] %vm345, %v373
        %409 = vst.msk [vmem:[%s297 + $0x8] sm:$0x3] %vm349, %v374
        %410 = vst.msk [vmem:[%s290] sm:$0xff] %vm309, %v403
        %vm411 = vcmask 517120
        %412 = vst.msk [vmem:[%s290 + $0x8] sm:$0x3] %vm411, %v406
        %s413 = sand.u32 %s128, 1
        %s414 = scalar_lea.sflag [#allocation4], %s413
        %s415 = sand.u32 %s128, 1
        %s416 = smul.addr %s415, 16
        %s417 = scalar_lea.vmem [#allocation8], %s416
        %s418 = sand.u32 %s156, 1
        %s419 = scalar_lea.sflag [#allocation10], %s418
        %s420 = sand.u32 %s156, 1
        %s421 = smul.addr %s420, 16
        %s422 = scalar_lea.vmem [#allocation9], %s421
        // Predicated region
        $region45: #{tpu_custom_call.1} parent=31 // pred_check
          %p423 = pneg %p138
        $region46: #{tpu_custom_call.1} parent=31 // pred_check_branch
          %425 = sbr.rel (%p423) target = $region48
        $region47: #{tpu_custom_call.1} parent=31 // pred_region
          %s426 = smul.u32 2, %s31
          %428 = vsyncadd %s414, 0
          %s429 = smul.addr %s30, 2
          %s430 = sadd.s32 %s426, %s429
          %s431 = smul.addr %s430, 8
          %s432 = scalar_lea.hbm %s3, %s431
          %s433 = sshll.u32 %s417, 4
          %s434 = int_to_ptr.vmem [resolvable:$true] %s433
          %s435 = sshll.u32 %s432, 4
          %s436 = int_to_ptr.hbm [resolvable:$true] %s435
          %441 = dma.vmem_to_hbm [thread:$0]  %s434, 256, %s436, %s414, 128, 128, 8
        $region48: #{tpu_custom_call.1} parent=31 // pred_fallthru
          _
        // Predicated region
        $region49: #{tpu_custom_call.1} parent=31 // pred_check
          %p442 = pneg %p166
        $region50: #{tpu_custom_call.1} parent=31 // pred_check_branch
          %444 = sbr.rel (%p442) target = $region52
        $region51: #{tpu_custom_call.1} parent=31 // pred_region
          %s445 = smul.u32 2, %s31
          %447 = vsyncadd %s419, 0
          %s448 = smul.addr %s30, 2
          %s449 = sadd.s32 %s445, %s448
          %s450 = smul.addr %s449, 8
          %s451 = scalar_lea.hbm %s4, %s450
          %s452 = sshll.u32 %s422, 4
          %s453 = int_to_ptr.vmem [resolvable:$true] %s452
          %s454 = sshll.u32 %s451, 4
          %s455 = int_to_ptr.hbm [resolvable:$true] %s454
          %460 = dma.vmem_to_hbm [thread:$0]  %s453, 256, %s455, %s419, 128, 128, 8
        $region52: #{tpu_custom_call.1} parent=31 // pred_fallthru
          _
      $region32: #{tpu_custom_call.1} parent=5 // pred_fallthru
        _
      %p461 = scmp.le.s32.totalorder 2, %s21
      // Predicated region
      $region53: #{tpu_custom_call.1} parent=5 // pred_check
        %p462 = pneg %p461
      $region54: #{tpu_custom_call.1} parent=5 // pred_check_branch
        %464 = sbr.rel (%p462) target = $region56
      $region55: #{tpu_custom_call.1} parent=5 // pred_region
        %s465 = ssub.s32 %s21, 2
        // Predicated region
        $region57: #{tpu_custom_call.1} parent=55 // pred_check
          %p466 = pneg %p144
        $region58: #{tpu_custom_call.1} parent=55 // pred_check_branch
          %468 = sbr.rel (%p466) target = $region60
        $region59: #{tpu_custom_call.1} parent=55 // pred_region
          %s469 = sand.u32 %s129, 1
          %s470 = scalar_lea.sflag [#allocation4], %s469
          %s471 = sand.u32 %s129, 1
          %s472 = smul.addr %s471, 16
          %s473 = scalar_lea.vmem [#allocation8], %s472
          %475 = dma.done %s470, 256
        $region60: #{tpu_custom_call.1} parent=55 // pred_fallthru
          _
        // Predicated region
        $region61: #{tpu_custom_call.1} parent=55 // pred_check
          %p476 = pneg %p172
        $region62: #{tpu_custom_call.1} parent=55 // pred_check_branch
          %478 = sbr.rel (%p476) target = $region64
        $region63: #{tpu_custom_call.1} parent=55 // pred_region
          %s479 = sand.u32 %s157, 1
          %s480 = scalar_lea.sflag [#allocation10], %s479
          %s481 = sand.u32 %s157, 1
          %s482 = smul.addr %s481, 16
          %s483 = scalar_lea.vmem [#allocation9], %s482
          %485 = dma.done %s480, 256
        $region64: #{tpu_custom_call.1} parent=55 // pred_fallthru
          _
      $region56: #{tpu_custom_call.1} parent=5 // pred_fallthru
        _
    $region6: #{tpu_custom_call.1} parent=1 // loop_footer
      %s25 = sadd.s32 1, %s21
    $region7: #{tpu_custom_call.1} parent=1 // loop_footer_branch
      %20 = sbr.rel target = $region3
    $region8: #{tpu_custom_call.1} parent=1 // loop_exit
      _
    %486 = vsyncpa [#allocation3], 1
    %s487 = scalar_lea.sflag [#allocation3], 1
    %488 = vsyncpa %s487, 1
    %489 = vsyncpa [#allocation6], 1
    %490 = vsyncpa [#allocation4], 1
    %s491 = scalar_lea.sflag [#allocation4], 1
    %492 = vsyncpa %s491, 1
    %493 = vsyncpa [#allocation10], 1
    %s494 = scalar_lea.sflag [#allocation10], 1
    %495 = vsyncpa %s494, 1

// kernel: tpu_custom_call.1
$region0: #{tpu_custom_call.1}
  #allocation0 [shape = 'u32[]', space=smem, size = 0x4, offset = 0x4, fixed_abs, tag = 'smem constant byte address 0x4 - core index']
  #allocation1 [shape = 'u32[72,128]{1,0:T(1,128)}', space=vmem, size = 0x9000, scoped, tag = 'internal scratch']
  %s0 = inlined_call_operand.hbm [shape: f32[5,10,64], index: 0, kind: input, shape index: {}]
  %s1 = inlined_call_operand.hbm [shape: f32[5,10,64], index: 1, kind: input, shape index: {}]
  %s2 = inlined_call_operand.hbm [shape: f32[5,10,64], index: 2, kind: input, shape index: {}]
  %s3 = inlined_call_operand.hbm [shape: f32[5,10,64], index: 3, kind: output, shape index: {0}]
  %s4 = inlined_call_operand.hbm [shape: f32[5,10,10], index: 4, kind: output, shape index: {1}]
  %5 = xla_tuple %s3, %s4
  %s6 = sld [smem:[#allocation0]]
  $region65: #{tpu_custom_call.1} parent=0
    _
  %s8 = ssub.s32 1, %s6
  %s9 = scalar_select 0, %s8, %s6
  $region1: #{tpu_custom_call.1} parent=0
    #allocation2 [shape = 'u8[16384]{0}', space=vmem, size = 0x4000, scoped, tag = 'input window, operand 0']
    #allocation3 [shape = 's32[2]{0}', space=sflag, size = 0x8, scoped, tag = 'scoped memory for tpu_custom_call.1']
    #allocation4 [shape = 's32[2]{0}', space=sflag, size = 0x8, scoped, tag = 'scoped memory for tpu_custom_call.1']
    #allocation5 [shape = 'u8[16384]{0}', space=vmem, size = 0x4000, scoped, tag = 'input window, operand 1']
    #allocation6 [shape = 's32[2]{0}', space=sflag, size = 0x8, scoped, tag = 'scoped memory for tpu_custom_call.1']
    #allocation7 [shape = 'u8[16384]{0}', space=vmem, size = 0x4000, scoped, tag = 'input window, operand 2']
    #allocation8 [shape = 'u8[16384]{0}', space=vmem, size = 0x4000, scoped, tag = 'output window, operand 0']
    #allocation9 [shape = 'u8[16384]{0}', space=vmem, size = 0x4000, scoped, tag = 'output window, operand 1']
    #allocation10 [shape = 's32[2]{0}', space=sflag, size = 0x8, scoped, tag = 'scoped memory for tpu_custom_call.1']
    %10 = vsyncpa [#allocation3], 0
    %s11 = scalar_lea.sflag [#allocation3], 1
    %12 = vsyncpa %s11, 0
    %13 = vsyncpa [#allocation6], 0
    %s14 = scalar_lea.sflag [#allocation6], 1
    %15 = vsyncpa %s14, 0
    %16 = vsyncpa [#allocation4], 0
    %s17 = scalar_lea.sflag [#allocation4], 1
    %18 = vsyncpa %s17, 0
    %19 = vsyncpa [#allocation10], 0
    %s20 = scalar_lea.sflag [#allocation10], 1
    %21 = vsyncpa %s20, 0
    loop: start=0, step=1, limit=7
    $region2: #{tpu_custom_call.1} parent=1 // loop_pre_header
      _
    $region3: #{tpu_custom_call.1} parent=1 // loop_header
      %s23 = sphi 0, %s27
      %p24 = scmp.ge.s32.totalorder %s23, 7
      %s30 = sphi 0, %s42
      %s31 = sphi 0, %s38
      %s32 = sphi 0, %s30
      %s33 = sphi 0, %s31
      %s34 = sphi 0, %s32
      %s35 = sphi 0, %s33
      %s47 = sphi 0, %s49
      %s50 = sphi 0, %s47
      %s51 = sphi 0, %s50
      %s67 = sphi 0, %s51
      %s73 = sphi 0, %s75
      %s76 = sphi 0, %s73
      %s77 = sphi 0, %s76
      %s93 = sphi 0, %s77
      %s99 = sphi 0, %s101
      %s102 = sphi 0, %s99
      %s103 = sphi 0, %s102
      %s119 = sphi 0, %s103
      %s127 = sphi 0, %s129
      %s130 = sphi 0, %s127
      %s131 = sphi 0, %s130
      %s147 = sphi 0, %s131
      %s155 = sphi 0, %s157
      %s158 = sphi 0, %s155
      %s159 = sphi 0, %s158
      %s175 = sphi 0, %s159
    $region4: #{tpu_custom_call.1} parent=1 // loop_header_branch
      %26 = sbr.rel (%p24) target = $region8
    $region5: #{tpu_custom_call.1} parent=1 // loop_body
      %s28 = ssub.s32 %s23, 1
      %s29 = ssub.s32 %s23, 2
      %s36 = sadd.s32 1, %s31
      %p37 = scmp.ge.s32.totalorder %s36, 1
      %s38 = scalar_select %p37, 0, %s36
      %s39 = sadd.s32 1, %s30
      %s40 = scalar_select %p37, %s39, %s30
      %p41 = scmp.ge.s32.totalorder %s40, 5
      %s42 = scalar_select %p41, 0, %s40
      %s43 = ssub.s32 %s30, %s42
      %s44 = ssub.s32 %s31, %s38
      %s45 = sor.u32 %s43, %s44
      %p46 = scmp.eq.s32.totalorder %s45, 0
      %s48 = sadd.s32 %s47, 1
      %s49 = scalar_select %p46, %s47, %s48
      %p52 = pneg %p46
      %p53 = scmp.eq.s32.totalorder %s23, 4
      %p54 = por %p52, %p53
      %p55 = scmp.ne.s32.totalorder %s47, %s50
      %p56 = scmp.eq.s32.totalorder %s23, 0
      %p57 = por %p55, %p56
      %p58 = scmp.ne.s32.totalorder %s47, %s50
      %p59 = scmp.eq.s32.totalorder %s28, 4
      %p60 = por %p58, %p59
      %p61 = scmp.ne.s32.totalorder %s50, %s51
      %p62 = scmp.eq.s32.totalorder %s28, 0
      %p63 = por %p61, %p62
      %p64 = scmp.ne.s32.totalorder %s50, %s51
      %p65 = scmp.eq.s32.totalorder %s29, 4
      %p66 = por %p64, %p65
      %p68 = scmp.ne.s32.totalorder %s51, %s67
      %p69 = scmp.eq.s32.totalorder %s29, 0
      %p70 = por %p68, %p69
      %s71 = ssub.s32 %s30, %s42
      %p72 = scmp.eq.s32.totalorder %s71, 0
      %s74 = sadd.s32 %s73, 1
      %s75 = scalar_select %p72, %s73, %s74
      %p78 = pneg %p72
      %p79 = scmp.eq.s32.totalorder %s23, 4
      %p80 = por %p78, %p79
      %p81 = scmp.ne.s32.totalorder %s73, %s76
      %p82 = scmp.eq.s32.totalorder %s23, 0
      %p83 = por %p81, %p82
      %p84 = scmp.ne.s32.totalorder %s73, %s76
      %p85 = scmp.eq.s32.totalorder %s28, 4
      %p86 = por %p84, %p85
      %p87 = scmp.ne.s32.totalorder %s76, %s77
      %p88 = scmp.eq.s32.totalorder %s28, 0
      %p89 = por %p87, %p88
      %p90 = scmp.ne.s32.totalorder %s76, %s77
      %p91 = scmp.eq.s32.totalorder %s29, 4
      %p92 = por %p90, %p91
      %p94 = scmp.ne.s32.totalorder %s77, %s93
      %p95 = scmp.eq.s32.totalorder %s29, 0
      %p96 = por %p94, %p95
      %s97 = ssub.s32 %s30, %s42
      %p98 = scmp.eq.s32.totalorder %s97, 0
      %s100 = sadd.s32 %s99, 1
      %s101 = scalar_select %p98, %s99, %s100
      %p104 = pneg %p98
      %p105 = scmp.eq.s32.totalorder %s23, 4
      %p106 = por %p104, %p105
      %p107 = scmp.ne.s32.totalorder %s99, %s102
      %p108 = scmp.eq.s32.totalorder %s23, 0
      %p109 = por %p107, %p108
      %p110 = scmp.ne.s32.totalorder %s99, %s102
      %p111 = scmp.eq.s32.totalorder %s28, 4
      %p112 = por %p110, %p111
      %p113 = scmp.ne.s32.totalorder %s102, %s103
      %p114 = scmp.eq.s32.totalorder %s28, 0
      %p115 = por %p113, %p114
      %p116 = scmp.ne.s32.totalorder %s102, %s103
      %p117 = scmp.eq.s32.totalorder %s29, 4
      %p118 = por %p116, %p117
      %p120 = scmp.ne.s32.totalorder %s103, %s119
      %p121 = scmp.eq.s32.totalorder %s29, 0
      %p122 = por %p120, %p121
      %s123 = ssub.s32 %s30, %s42
      %s124 = ssub.s32 %s31, %s38
      %s125 = sor.u32 %s123, %s124
      %p126 = scmp.eq.s32.totalorder %s125, 0
      %s128 = sadd.s32 %s127, 1
      %s129 = scalar_select %p126, %s127, %s128
      %p132 = pneg %p126
      %p133 = scmp.eq.s32.totalorder %s23, 4
      %p134 = por %p132, %p133
      %p135 = scmp.ne.s32.totalorder %s127, %s130
      %p136 = scmp.eq.s32.totalorder %s23, 0
      %p137 = por %p135, %p136
      %p138 = scmp.ne.s32.totalorder %s127, %s130
      %p139 = scmp.eq.s32.totalorder %s28, 4
      %p140 = por %p138, %p139
      %p141 = scmp.ne.s32.totalorder %s130, %s131
      %p142 = scmp.eq.s32.totalorder %s28, 0
      %p143 = por %p141, %p142
      %p144 = scmp.ne.s32.totalorder %s130, %s131
      %p145 = scmp.eq.s32.totalorder %s29, 4
      %p146 = por %p144, %p145
      %p148 = scmp.ne.s32.totalorder %s131, %s147
      %p149 = scmp.eq.s32.totalorder %s29, 0
      %p150 = por %p148, %p149
      %s151 = ssub.s32 %s30, %s42
      %s152 = ssub.s32 %s31, %s38
      %s153 = sor.u32 %s151, %s152
      %p154 = scmp.eq.s32.totalorder %s153, 0
      %s156 = sadd.s32 %s155, 1
      %s157 = scalar_select %p154, %s155, %s156
      %p160 = pneg %p154
      %p161 = scmp.eq.s32.totalorder %s23, 4
      %p162 = por %p160, %p161
      %p163 = scmp.ne.s32.totalorder %s155, %s158
      %p164 = scmp.eq.s32.totalorder %s23, 0
      %p165 = por %p163, %p164
      %p166 = scmp.ne.s32.totalorder %s155, %s158
      %p167 = scmp.eq.s32.totalorder %s28, 4
      %p168 = por %p166, %p167
      %p169 = scmp.ne.s32.totalorder %s158, %s159
      %p170 = scmp.eq.s32.totalorder %s28, 0
      %p171 = por %p169, %p170
      %p172 = scmp.ne.s32.totalorder %s158, %s159
      %p173 = scmp.eq.s32.totalorder %s29, 4
      %p174 = por %p172, %p173
      %p176 = scmp.ne.s32.totalorder %s159, %s175
      %p177 = scmp.eq.s32.totalorder %s29, 0
      %p178 = por %p176, %p177
      %p179 = scmp.le.s32.totalorder 1, %s23
      %p180 = scmp.lt.s32.totalorder %s23, 6
      %p181 = pnand %p179, %p180
      %p182 = pneg %p181
      // Predicated region
      $region9: #{tpu_custom_call.1} parent=5 // pred_check
        _
      $region10: #{tpu_custom_call.1} parent=5 // pred_check_branch
        %184 = sbr.rel (%p181) target = $region12
      $region11: #{tpu_custom_call.1} parent=5 // pred_region
        %s185 = ssub.s32 %s23, 1
      $region12: #{tpu_custom_call.1} parent=5 // pred_fallthru
        _
      %p186 = scmp.lt.s32.totalorder %s23, 5
      // Predicated region
      $region13: #{tpu_custom_call.1} parent=5 // pred_check
        %p187 = pneg %p186
      $region14: #{tpu_custom_call.1} parent=5 // pred_check_branch
        %189 = sbr.rel (%p187) target = $region16
      $region15: #{tpu_custom_call.1} parent=5 // pred_region
        // Predicated region
        $region17: #{tpu_custom_call.1} parent=15 // pred_check
          %p190 = pneg %p57
        $region18: #{tpu_custom_call.1} parent=15 // pred_check_branch
          %192 = sbr.rel (%p190) target = $region20
        $region19: #{tpu_custom_call.1} parent=15 // pred_region
          %s193 = sand.u32 %s47, 1
          %s194 = scalar_lea.sflag [#allocation3], %s193
          %s195 = sand.u32 %s47, 1
          %s196 = smul.addr %s195, 16
          %s197 = scalar_lea.vmem [#allocation2], %s196
          %s198 = smul.u32 2, %s31
          %200 = vsyncadd %s194, 0
          %s201 = smul.addr %s30, 2
          %s202 = sadd.s32 %s198, %s201
          %s203 = smul.addr %s202, 8
          %s204 = scalar_lea.hbm %s0, %s203
          %s205 = sshll.u32 %s204, 4
          %s206 = int_to_ptr.hbm [resolvable:$true] %s205
          %s207 = sshll.u32 %s197, 4
          %s208 = int_to_ptr.vmem [resolvable:$true] %s207
          %213 = dma.hbm_to_vmem [thread:$0]  %s206, 256, %s208, %s194, 128, 128, 8
        $region20: #{tpu_custom_call.1} parent=15 // pred_fallthru
          _
        // Predicated region
        $region21: #{tpu_custom_call.1} parent=15 // pred_check
          %p214 = pneg %p83
        $region22: #{tpu_custom_call.1} parent=15 // pred_check_branch
          %216 = sbr.rel (%p214) target = $region24
        $region23: #{tpu_custom_call.1} parent=15 // pred_region
          %s217 = sand.u32 %s23, 1
          %s218 = scalar_lea.sflag [#allocation6], %s217
          %s219 = sand.u32 %s73, 1
          %s220 = smul.addr %s219, 16
          %s221 = scalar_lea.vmem [#allocation5], %s220
          %223 = vsyncadd %s218, 0
          %s224 = smul.addr %s30, 2
          %s225 = smul.addr %s224, 8
          %s226 = scalar_lea.hbm %s1, %s225
          %s227 = sshll.u32 %s226, 4
          %s228 = int_to_ptr.hbm [resolvable:$true] %s227
          %s229 = sshll.u32 %s221, 4
          %s230 = int_to_ptr.vmem [resolvable:$true] %s229
          %235 = dma.hbm_to_vmem [thread:$0]  %s228, 256, %s230, %s218, 128, 128, 8
        $region24: #{tpu_custom_call.1} parent=15 // pred_fallthru
          _
        // Predicated region
        $region25: #{tpu_custom_call.1} parent=15 // pred_check
          %p236 = pneg %p109
        $region26: #{tpu_custom_call.1} parent=15 // pred_check_branch
          %238 = sbr.rel (%p236) target = $region28
        $region27: #{tpu_custom_call.1} parent=15 // pred_region
          %s239 = sand.u32 %s23, 1
          %s240 = scalar_lea.sflag [#allocation6], %s239
          %s241 = sand.u32 %s99, 1
          %s242 = smul.addr %s241, 16
          %s243 = scalar_lea.vmem [#allocation7], %s242
          %245 = vsyncadd %s240, 0
          %s246 = smul.addr %s30, 2
          %s247 = smul.addr %s246, 8
          %s248 = scalar_lea.hbm %s2, %s247
          %s249 = sshll.u32 %s248, 4
          %s250 = int_to_ptr.hbm [resolvable:$true] %s249
          %s251 = sshll.u32 %s243, 4
          %s252 = int_to_ptr.vmem [resolvable:$true] %s251
          %257 = dma.hbm_to_vmem [thread:$0]  %s250, 256, %s252, %s240, 128, 128, 8
        $region28: #{tpu_custom_call.1} parent=15 // pred_fallthru
          _
      $region16: #{tpu_custom_call.1} parent=5 // pred_fallthru
        _
      %p258 = scmp.le.s32.totalorder 1, %s23
      %p259 = scmp.lt.s32.totalorder %s23, 6
      %p260 = pnand %p258, %p259
      %p261 = pneg %p260
      // Predicated region
      $region29: #{tpu_custom_call.1} parent=5 // pred_check
        _
      $region30: #{tpu_custom_call.1} parent=5 // pred_check_branch
        %263 = sbr.rel (%p260) target = $region32
      $region31: #{tpu_custom_call.1} parent=5 // pred_region
        %s264 = ssub.s32 %s23, 1
        %s265 = sand.u32 %s50, 1
        %s266 = scalar_lea.sflag [#allocation3], %s265
        %s267 = sand.u32 %s50, 1
        %s268 = smul.addr %s267, 16
        %s269 = scalar_lea.vmem [#allocation2], %s268
        // Predicated region
        $region33: #{tpu_custom_call.1} parent=31 // pred_check
          %p270 = pneg %p63
        $region34: #{tpu_custom_call.1} parent=31 // pred_check_branch
          %272 = sbr.rel (%p270) target = $region36
        $region35: #{tpu_custom_call.1} parent=31 // pred_region
          %274 = dma.done %s266, 256
        $region36: #{tpu_custom_call.1} parent=31 // pred_fallthru
          _
        %s275 = sand.u32 %s28, 1
        %s276 = scalar_lea.sflag [#allocation6], %s275
        %s277 = sand.u32 %s76, 1
        %s278 = smul.addr %s277, 16
        %s279 = scalar_lea.vmem [#allocation5], %s278
        // Predicated region
        $region37: #{tpu_custom_call.1} parent=31 // pred_check
          %p280 = pneg %p89
        $region38: #{tpu_custom_call.1} parent=31 // pred_check_branch
          %282 = sbr.rel (%p280) target = $region40
        $region39: #{tpu_custom_call.1} parent=31 // pred_region
          %284 = dma.done %s276, 256
        $region40: #{tpu_custom_call.1} parent=31 // pred_fallthru
          _
        %s285 = sand.u32 %s28, 1
        %s286 = scalar_lea.sflag [#allocation6], %s285
        %s287 = sand.u32 %s102, 1
        %s288 = smul.addr %s287, 16
        %s289 = scalar_lea.vmem [#allocation7], %s288
        // Predicated region
        $region41: #{tpu_custom_call.1} parent=31 // pred_check
          %p290 = pneg %p115
        $region42: #{tpu_custom_call.1} parent=31 // pred_check_branch
          %292 = sbr.rel (%p290) target = $region44
        $region43: #{tpu_custom_call.1} parent=31 // pred_region
          %294 = dma.done %s286, 256
        $region44: #{tpu_custom_call.1} parent=31 // pred_fallthru
          _
        %s295 = sand.u32 %s50, 1
        %s296 = scalar_lea.sflag [#allocation3], %s295
        %s297 = sand.u32 %s50, 1
        %s298 = smul.addr %s297, 16
        %s299 = scalar_lea.vmem [#allocation2], %s298
        %p300 = pneg %p63
        %p301 = pneg %p60
        %s302 = sand.u32 %s28, 1
        %s303 = scalar_lea.sflag [#allocation6], %s302
        %s304 = sand.u32 %s76, 1
        %s305 = smul.addr %s304, 16
        %s306 = scalar_lea.vmem [#allocation5], %s305
        %p307 = pneg %p89
        %p308 = pneg %p86
        %s309 = sand.u32 %s28, 1
        %s310 = scalar_lea.sflag [#allocation6], %s309
        %s311 = sand.u32 %s102, 1
        %s312 = smul.addr %s311, 16
        %s313 = scalar_lea.vmem [#allocation7], %s312
        %p314 = pneg %p115
        %p315 = pneg %p112
        %p316 = pneg %p143
        %p317 = pneg %p140
        %s318 = sand.u32 %s130, 1
        %s319 = scalar_lea.sflag [#allocation4], %s318
        %s320 = sand.u32 %s130, 1
        %s321 = smul.addr %s320, 16
        %s322 = scalar_lea.vmem [#allocation8], %s321
        %p323 = pneg %p171
        %p324 = pneg %p168
        %s325 = sand.u32 %s158, 1
        %s326 = scalar_lea.sflag [#allocation10], %s325
        %s327 = sand.u32 %s158, 1
        %s328 = smul.addr %s327, 16
        %s329 = scalar_lea.vmem [#allocation9], %s328
        %s330 = smul.u32 2, %s33
        %s331 = smul.u32 2, %s33
        %s332 = smul.u32 2, %s33
        %v333 = vld [vmem:[%s269] sm:$0xff]
        %v334 = vld [vmem:[%s269 + $0x8] sm:$0x3]
        %v335 = vld [vmem:[%s279] sm:$0xff]
        %v336 = vld [vmem:[%s279 + $0x8] sm:$0x3]
        %v337 = vld [vmem:[%s289] sm:$0xff]
        %v338 = vld [vmem:[%s289 + $0x8] sm:$0x3]
        %v339 = vmul.f32 %v333, 0.125
        %v340 = vmul.f32 %v334, 0.125
        %vm341 = vcmask 523264
        %v343 = vsel %vm341, %v339, 0
        %v346 = vsel %vm341, %v340, 0
        %v349 = vsel %vm341, %v335, 0
        %v352 = vsel %vm341, %v336, 0
        %354 = vmatpush.xpose.msra.mxu0 0.0
        %355 = vmatpush.xpose.msra.mxu0 0.0
        %356 = vmatpush.xpose.msra.mxu0 0.0
        %357 = vmatpush.xpose.msra.mxu0 0.0
        %358 = vmatpush.xpose.msra.mxu0 0.0
        %359 = vmatpush.xpose.msra.mxu0 0.0
        %360 = vmatpush.xpose.msra.mxu0 0.0
        %361 = vmatpush.xpose.msra.mxu0 0.0
        %362 = vmatpush.xpose.msra.mxu0 0.0
        %363 = vmatpush.xpose.msra.mxu0 0.0
        %364 = vmatpush.xpose.msra.mxu0 0.0
        %365 = vmatpush.xpose.msra.mxu0 0.0
        %366 = vmatpush.xpose.msra.mxu0 0.0
        %367 = vmatpush.xpose.msra.mxu0 0.0
        %368 = vmatpush.xpose.msra.mxu0 %v352
        %369 = vmatpush.xpose.msra.mxu0 %v349
        %370 = vmatmul.f32.gmra.mxu0 %v343
        %v371 = vpop.f32.mrf.mxu0
        %v372 = vadd.f32 0.0, %v371
        %373 = vmatmul.f32.gmra.mxu0 %v346
        %v374 = vpop.f32.mrf.mxu0
        %v375 = vadd.f32 0.0, %v374
        %376 = vdwg.mxu0
        %vm377 = vcmask 80896
        %v378 = vsel %vm377, %v372, -inf
        %379 = vmax.xlane.f32.xlu0 %v378
        %v380 = vpop.xlane.xlu0 %379
        %vm381 = vcmask 74752
        %v382 = vsel %vm381, %v375, -inf
        %383 = vmax.xlane.f32.xlu0 %v382
        %v384 = vpop.xlane.xlu0 %383
        %v385 = vsub.f32 %v372, %v380
        %v386 = vsub.f32 %v375, %v384
        %v387 = vmul.f32 %v385, 1.442695
        %v388 = vpow.pop %v387
        %v389 = vmul.f32 %v386, 1.442695
        %v390 = vpow.pop %v389
        %v391 = vsel %vm377, %v388, 0.0
        %392 = vadd.xlane.f32.xlu0 %v391
        %v393 = vpop.xlane.xlu0 %392
        %v394 = vsel %vm381, %v390, 0.0
        %395 = vadd.xlane.f32.xlu0 %v394
        %v396 = vpop.xlane.xlu0 %395
        %v397 = vrcp.pop %v393
        %v398 = vrcp.pop %v396
        %v399 = vmul.f32 %v393, %v397
        %v400 = vmul.f32 %v396, %v398
        %v401 = vsub.f32 2.0, %v399
        %v402 = vsub.f32 2.0, %v400
        %v403 = vmul.f32 %v397, %v401
        %v404 = vmul.f32 %v398, %v402
        %v405 = vmul.f32 %v388, %v403
        %v406 = vmul.f32 %v390, %v404
        %v408 = vsel %vm377, %v405, 0
        %v411 = vsel %vm377, %v406, 0
        %vm413 = vcmask 1041408
        %v415 = vsel %vm413, %v338, 0
        %417 = vmatpush.msra.mxu0 0.0
        %418 = vmatpush.msra.mxu0 0.0
        %419 = vmatpush.msra.mxu0 0.0
        %420 = vmatpush.msra.mxu0 0.0
        %421 = vmatpush.msra.mxu0 0.0
        %422 = vmatpush.msra.mxu0 0.0
        %423 = vmatpush.msra.mxu0 0.0
        %424 = vmatpush.msra.mxu0 0.0
        %425 = vmatpush.msra.mxu0 0.0
        %426 = vmatpush.msra.mxu0 0.0
        %427 = vmatpush.msra.mxu0 0.0
        %428 = vmatpush.msra.mxu0 0.0
        %429 = vmatpush.msra.mxu0 0.0
        %430 = vmatpush.msra.mxu0 0.0
        %431 = vmatpush.msra.mxu0 %v415
        %432 = vmatpush.msra.mxu0 %v337
        %433 = vmatmul.f32.gmra.mxu0 %v408
        %v434 = vpop.f32.mrf.mxu0
        %v435 = vadd.f32 0.0, %v434
        %436 = vmatmul.f32.gmra.mxu0 %v411
        %v437 = vpop.f32.mrf.mxu0
        %v438 = vadd.f32 0.0, %v437
        %439 = vdwg.mxu0
        %440 = vst.msk [vmem:[%s329] sm:$0xff] %vm377, %v405
        %441 = vst.msk [vmem:[%s329 + $0x8] sm:$0x3] %vm381, %v406
        %442 = vst.msk [vmem:[%s322] sm:$0xff] %vm341, %v435
        %vm443 = vcmask 517120
        %444 = vst.msk [vmem:[%s322 + $0x8] sm:$0x3] %vm443, %v438
        %s445 = sand.u32 %s130, 1
        %s446 = scalar_lea.sflag [#allocation4], %s445
        %s447 = sand.u32 %s130, 1
        %s448 = smul.addr %s447, 16
        %s449 = scalar_lea.vmem [#allocation8], %s448
        %s450 = sand.u32 %s158, 1
        %s451 = scalar_lea.sflag [#allocation10], %s450
        %s452 = sand.u32 %s158, 1
        %s453 = smul.addr %s452, 16
        %s454 = scalar_lea.vmem [#allocation9], %s453
        // Predicated region
        $region45: #{tpu_custom_call.1} parent=31 // pred_check
          %p455 = pneg %p140
        $region46: #{tpu_custom_call.1} parent=31 // pred_check_branch
          %457 = sbr.rel (%p455) target = $region48
        $region47: #{tpu_custom_call.1} parent=31 // pred_region
          %s458 = smul.u32 2, %s33
          %460 = vsyncadd %s446, 0
          %s461 = smul.addr %s32, 2
          %s462 = sadd.s32 %s458, %s461
          %s463 = smul.addr %s462, 8
          %s464 = scalar_lea.hbm %s3, %s463
          %s465 = sshll.u32 %s449, 4
          %s466 = int_to_ptr.vmem [resolvable:$true] %s465
          %s467 = sshll.u32 %s464, 4
          %s468 = int_to_ptr.hbm [resolvable:$true] %s467
          %473 = dma.vmem_to_hbm [thread:$0]  %s466, 256, %s468, %s446, 128, 128, 8
        $region48: #{tpu_custom_call.1} parent=31 // pred_fallthru
          _
        // Predicated region
        $region49: #{tpu_custom_call.1} parent=31 // pred_check
          %p474 = pneg %p168
        $region50: #{tpu_custom_call.1} parent=31 // pred_check_branch
          %476 = sbr.rel (%p474) target = $region52
        $region51: #{tpu_custom_call.1} parent=31 // pred_region
          %s477 = smul.u32 2, %s33
          %479 = vsyncadd %s451, 0
          %s480 = smul.addr %s32, 2
          %s481 = sadd.s32 %s477, %s480
          %s482 = smul.addr %s481, 8
          %s483 = scalar_lea.hbm %s4, %s482
          %s484 = sshll.u32 %s454, 4
          %s485 = int_to_ptr.vmem [resolvable:$true] %s484
          %s486 = sshll.u32 %s483, 4
          %s487 = int_to_ptr.hbm [resolvable:$true] %s486
          %492 = dma.vmem_to_hbm [thread:$0]  %s485, 256, %s487, %s451, 128, 128, 8
        $region52: #{tpu_custom_call.1} parent=31 // pred_fallthru
          _
      $region32: #{tpu_custom_call.1} parent=5 // pred_fallthru
        _
      %p493 = scmp.le.s32.totalorder 2, %s23
      // Predicated region
      $region53: #{tpu_custom_call.1} parent=5 // pred_check
        %p494 = pneg %p493
      $region54: #{tpu_custom_call.1} parent=5 // pred_check_branch
        %496 = sbr.rel (%p494) target = $region56
      $region55: #{tpu_custom_call.1} parent=5 // pred_region
        %s497 = ssub.s32 %s23, 2
        // Predicated region
        $region57: #{tpu_custom_call.1} parent=55 // pred_check
          %p498 = pneg %p146
        $region58: #{tpu_custom_call.1} parent=55 // pred_check_branch
          %500 = sbr.rel (%p498) target = $region60
        $region59: #{tpu_custom_call.1} parent=55 // pred_region
          %s501 = sand.u32 %s131, 1
          %s502 = scalar_lea.sflag [#allocation4], %s501
          %s503 = sand.u32 %s131, 1
          %s504 = smul.addr %s503, 16
          %s505 = scalar_lea.vmem [#allocation8], %s504
          %507 = dma.done %s502, 256
        $region60: #{tpu_custom_call.1} parent=55 // pred_fallthru
          _
        // Predicated region
        $region61: #{tpu_custom_call.1} parent=55 // pred_check
          %p508 = pneg %p174
        $region62: #{tpu_custom_call.1} parent=55 // pred_check_branch
          %510 = sbr.rel (%p508) target = $region64
        $region63: #{tpu_custom_call.1} parent=55 // pred_region
          %s511 = sand.u32 %s159, 1
          %s512 = scalar_lea.sflag [#allocation10], %s511
          %s513 = sand.u32 %s159, 1
          %s514 = smul.addr %s513, 16
          %s515 = scalar_lea.vmem [#allocation9], %s514
          %517 = dma.done %s512, 256
        $region64: #{tpu_custom_call.1} parent=55 // pred_fallthru
          _
      $region56: #{tpu_custom_call.1} parent=5 // pred_fallthru
        _
    $region6: #{tpu_custom_call.1} parent=1 // loop_footer
      %s27 = sadd.s32 1, %s23
    $region7: #{tpu_custom_call.1} parent=1 // loop_footer_branch
      %22 = sbr.rel target = $region3
    $region8: #{tpu_custom_call.1} parent=1 // loop_exit
      _
    %518 = vsyncpa [#allocation3], 1
    %s519 = scalar_lea.sflag [#allocation3], 1
    %520 = vsyncpa %s519, 1
    %521 = vsyncpa [#allocation6], 1
    %s522 = scalar_lea.sflag [#allocation6], 1
    %523 = vsyncpa %s522, 1
    %524 = vsyncpa [#allocation4], 1
    %s525 = scalar_lea.sflag [#allocation4], 1
    %526 = vsyncpa %s525, 1
    %527 = vsyncpa [#allocation10], 1
    %s528 = scalar_lea.sflag [#allocation10], 1
    %529 = vsyncpa %s528, 1

</llo_original>
